<compile_context>
chip_gen: v6e
topology: v6e:2x2x1
jax: 0.10.0
libtpu: 0.0.40
codegen_flags: <defaults>
</compile_context>

<pallas_src>
import jax
import jax.numpy as jnp
from jax.experimental import pallas as pl
from jax.experimental.pallas import tpu as pltpu

# logical (PyTorch) dims
DIM_IN = 1000
DIM_OUT = 10
HIDDEN_SIZE = 100

# lane-dense padded dims (lane axis multiples of 128); the input dim stays unpadded.
PAD_HID = 128
PAD_OUT = 128


def _round_up(n, m):
    return ((n + m - 1) // m) * m


def tiny_mlp_kernel(x_ref, w1_ref, b1_ref, w2_ref, b2_ref, o_ref):
    # Cast the activation tile to the (bf16) weight dtype -> native MXU input rate.
    x = x_ref[...].astype(w1_ref.dtype)
    # layer1: x @ W1 + b1 (MXU, f32 accumulate), then ReLU (VPU)
    h = jnp.dot(x, w1_ref[...], preferred_element_type=jnp.float32)
    h = jnp.maximum(h + b1_ref[...].astype(jnp.float32), 0.0)
    # layer2: h @ W2 + b2 (fused — hidden activations never leave VMEM)
    y = jnp.dot(h.astype(w2_ref.dtype), w2_ref[...], preferred_element_type=jnp.float32)
    o_ref[...] = (y + b2_ref[...].astype(jnp.float32)).astype(o_ref.dtype)


def tiny_model_forward(x, w1, b1, w2, b2, *, tb=1024):
    """x: [B, DIM_IN] (f32 or bf16) -> [B, DIM_OUT] in x.dtype.

    w1: [DIM_IN, PAD_HID], b1: [1, PAD_HID], w2: [PAD_HID, PAD_OUT], b2: [1, PAD_OUT]
    (bf16, zero outside the logical 1000x100 / 100x10 regions).
    """
    B = x.shape[0]
    out_dtype = x.dtype
    itemsize = jnp.dtype(x.dtype).itemsize

    # Batch tiling: no padding anywhere.
    #  - B <= tb: single tile whose block shape equals the full array dims (always legal).
    #  - B >  tb: tb rounded to the sublane tile (8 f32 / 16 bf16); last tile may be partial
    #    (OOB input rows produce garbage only in discarded, masked output rows).
    sublane = 16 if x.dtype == jnp.bfloat16 else 8
    if B <= tb:
        tb_eff = B
    else:
        tb_eff = _round_up(min(tb, B), sublane)
    num_tiles = pl.cdiv(B, tb_eff)

    # Deepen the x input pipeline when there are enough tiles for it to matter.
    x_spec_kwargs = {}
    x_bufs = 2
    if num_tiles > 2:
        x_spec_kwargs["pipeline_mode"] = pl.Buffered(3)
        x_bufs = 3

    w_bytes = sum(int(a.size) * a.dtype.itemsize for a in (w1, b1, w2, b2))
    x_block_bytes = tb_eff * DIM_IN * itemsize
    out_block_bytes = tb_eff * PAD_OUT * jnp.dtype(out_dtype).itemsize
    vmem_limit = int(x_bufs * x_block_bytes + 2 * out_block_bytes + 2 * w_bytes) + (4 << 20)
    vmem_limit = max(vmem_limit, 16 << 20)

    flops = 2 * B * DIM_IN * PAD_HID + 2 * B * PAD_HID * PAD_OUT
    bytes_accessed = (
        B * DIM_IN * itemsize + w_bytes + B * PAD_OUT * jnp.dtype(out_dtype).itemsize
    )

    out = pl.pallas_call(
        tiny_mlp_kernel,
        out_shape=jax.ShapeDtypeStruct((B, PAD_OUT), out_dtype),
        grid=(num_tiles,),
        in_specs=[
            # x streamed per batch tile, unpadded feature axis (full-extent last dim).
            pl.BlockSpec((tb_eff, DIM_IN), lambda i: (i, 0), **x_spec_kwargs),
            # Weights / biases: constant block index -> DMA'd once, VMEM-resident.
            pl.BlockSpec((DIM_IN, PAD_HID), lambda i: (0, 0)),
            pl.BlockSpec((1, PAD_HID), lambda i: (0, 0)),
            pl.BlockSpec((PAD_HID, PAD_OUT), lambda i: (0, 0)),
            pl.BlockSpec((1, PAD_OUT), lambda i: (0, 0)),
        ],
        out_specs=pl.BlockSpec((tb_eff, PAD_OUT), lambda i: (i, 0)),
        compiler_params=pltpu.CompilerParams(
            dimension_semantics=("parallel",),
            vmem_limit_bytes=vmem_limit,
        ),
        cost_estimate=pl.CostEstimate(
            flops=flops, transcendentals=0, bytes_accessed=bytes_accessed
        ),
    )(x, w1, b1, w2, b2)

    # Slice the logical 10 output features out of the lane-dense slab.
    return out[:, :DIM_OUT]


def init_params(key, dtype=jnp.bfloat16):
    """Deterministic init mirroring torch.nn.Linear's U(-1/sqrt(fan_in), 1/sqrt(fan_in)).

    Returns (kernel params in padded [in, out] bf16 layout, f32 logical params for reference).
    """
    k1, k2, k3, k4 = jax.random.split(key, 4)
    lim1 = 1.0 / (DIM_IN ** 0.5)
    lim2 = 1.0 / (HIDDEN_SIZE ** 0.5)

    w1_v = jax.random.uniform(k1, (DIM_IN, HIDDEN_SIZE), jnp.float32, -lim1, lim1)
    b1_v = jax.random.uniform(k2, (1, HIDDEN_SIZE), jnp.float32, -lim1, lim1)
    w2_v = jax.random.uniform(k3, (HIDDEN_SIZE, DIM_OUT), jnp.float32, -lim2, lim2)
    b2_v = jax.random.uniform(k4, (1, DIM_OUT), jnp.float32, -lim2, lim2)

    w1 = jnp.zeros((DIM_IN, PAD_HID), dtype).at[:, :HIDDEN_SIZE].set(w1_v.astype(dtype))
    b1 = jnp.zeros((1, PAD_HID), dtype).at[:, :HIDDEN_SIZE].set(b1_v.astype(dtype))
    w2 = jnp.zeros((PAD_HID, PAD_OUT), dtype).at[:HIDDEN_SIZE, :DIM_OUT].set(w2_v.astype(dtype))
    b2 = jnp.zeros((1, PAD_OUT), dtype).at[:, :DIM_OUT].set(b2_v.astype(dtype))
    return (w1, b1, w2, b2), (w1_v, b1_v, w2_v, b2_v)


if __name__ == "__main__":
    key = jax.random.PRNGKey(0)
    kx, kp = jax.random.split(key)

    B = 8
    x = jax.random.normal(kx, (B, DIM_IN), dtype=jnp.float32)
    (w1, b1, w2, b2), (w1_v, b1_v, w2_v, b2_v) = init_params(kp)

    out = tiny_model_forward(x, w1, b1, w2, b2)
    out = jax.block_until_ready(out)

    # sanity check vs plain-JAX f32 reference (tolerance loosened for bf16 weights)
    ref = jnp.maximum(x @ w1_v + b1_v, 0.0) @ w2_v + b2_v
    assert out.shape == (B, DIM_OUT)
    max_err = float(jnp.max(jnp.abs(out.astype(jnp.float32) - ref)))
    assert jnp.allclose(out.astype(jnp.float32), ref, atol=5e-2, rtol=5e-2), max_err

    print("KERNEL_OK")
</pallas_src>

<mosaic_0001>
module attributes {stable_mosaic.version = 11 : i64} {
  func.func @tiny_mlp_kernel(%arg0: i32, %arg1: memref<8x1000xf32, #tpu.memory_space<vmem>>, %arg2: memref<1000x128xbf16, #tpu.memory_space<vmem>>, %arg3: memref<1x128xbf16, #tpu.memory_space<vmem>>, %arg4: memref<128x128xbf16, #tpu.memory_space<vmem>>, %arg5: memref<1x128xbf16, #tpu.memory_space<vmem>>, %arg6: memref<8x128xf32, #tpu.memory_space<vmem>>) attributes {dimension_semantics = [#tpu.dimension_semantics<parallel>], iteration_bounds = array<i64: 1>, scalar_prefetch = 0 : i64, scratch_operands = 0 : i64, tpu.core_type = #tpu.core_type<tc>, window_params = [{transform_indices = @transform_0, window_bounds = array<i64: 8, 1000>}, {pipeline_mode = #tpu.pipeline_mode<synchronous>, transform_indices = @transform_1, window_bounds = array<i64: 1000, 128>}, {pipeline_mode = #tpu.pipeline_mode<synchronous>, transform_indices = @transform_2, window_bounds = array<i64: 1, 128>}, {pipeline_mode = #tpu.pipeline_mode<synchronous>, transform_indices = @transform_3, window_bounds = array<i64: 128, 128>}, {pipeline_mode = #tpu.pipeline_mode<synchronous>, transform_indices = @transform_4, window_bounds = array<i64: 1, 128>}, {transform_indices = @transform_5, window_bounds = array<i64: 8, 128>}]} {
    %c0 = arith.constant 0 : index
    %c0_0 = arith.constant 0 : index
    %0 = vector.load %arg1[%c0, %c0_0] : memref<8x1000xf32, #tpu.memory_space<vmem>>, vector<8x1000xf32>
    %1 = arith.truncf %0 : vector<8x1000xf32> to vector<8x1000xbf16>
    %c0_1 = arith.constant 0 : index
    %c0_2 = arith.constant 0 : index
    %2 = vector.load %arg2[%c0_1, %c0_2] : memref<1000x128xbf16, #tpu.memory_space<vmem>>, vector<1000x128xbf16>
    %cst = arith.constant dense<0.000000e+00> : vector<8x128xf32>
    %3 = tpu.matmul %1, %2, %cst {dimension_numbers = #tpu.dot_dimension_numbers<[1], [0], [0], [1], [0, 0, 1, 1], [], []>} : vector<8x1000xbf16>, vector<1000x128xbf16>, vector<8x128xf32> -> vector<8x128xf32>
    %c0_3 = arith.constant 0 : index
    %c0_4 = arith.constant 0 : index
    %4 = vector.load %arg3[%c0_3, %c0_4] : memref<1x128xbf16, #tpu.memory_space<vmem>>, vector<1x128xbf16>
    %5 = arith.extf %4 : vector<1x128xbf16> to vector<1x128xf32>
    %6 = vector.broadcast %5 : vector<1x128xf32> to vector<8x128xf32>
    %7 = arith.addf %3, %6 : vector<8x128xf32>
    %cst_5 = arith.constant 0.000000e+00 : f32
    %8 = vector.broadcast %cst_5 : f32 to vector<8x128xf32>
    %9 = arith.maximumf %7, %8 : vector<8x128xf32>
    %10 = arith.truncf %9 : vector<8x128xf32> to vector<8x128xbf16>
    %c0_6 = arith.constant 0 : index
    %c0_7 = arith.constant 0 : index
    %11 = vector.load %arg4[%c0_6, %c0_7] : memref<128x128xbf16, #tpu.memory_space<vmem>>, vector<128x128xbf16>
    %cst_8 = arith.constant dense<0.000000e+00> : vector<8x128xf32>
    %12 = tpu.matmul %10, %11, %cst_8 {dimension_numbers = #tpu.dot_dimension_numbers<[1], [0], [0], [1], [0, 0, 1, 1], [], []>} : vector<8x128xbf16>, vector<128x128xbf16>, vector<8x128xf32> -> vector<8x128xf32>
    %c0_9 = arith.constant 0 : index
    %c0_10 = arith.constant 0 : index
    %13 = vector.load %arg5[%c0_9, %c0_10] : memref<1x128xbf16, #tpu.memory_space<vmem>>, vector<1x128xbf16>
    %14 = arith.extf %13 : vector<1x128xbf16> to vector<1x128xf32>
    %15 = vector.broadcast %14 : vector<1x128xf32> to vector<8x128xf32>
    %16 = arith.addf %12, %15 : vector<8x128xf32>
    %c0_11 = arith.constant 0 : index
    %c0_12 = arith.constant 0 : index
    %17 = vector.load %arg6[%c0_11, %c0_12] : memref<8x128xf32, #tpu.memory_space<vmem>>, vector<8x128xf32>
    tpu.vector_store %arg6[%c0_11, %c0_12], %16 {strides = array<i32>} : memref<8x128xf32, #tpu.memory_space<vmem>>, vector<8x128xf32>,
    return
  }
  func.func @transform_0(%arg0: i32) -> (i32, i32) {
    %c0_i32 = arith.constant 0 : i32
    %c0_i32_0 = arith.constant 0 : i32
    return %arg0, %c0_i32 : i32, i32
  }
  func.func @transform_1(%arg0: i32) -> (i32, i32) {
    %c0_i32 = arith.constant 0 : i32
    %c0_i32_0 = arith.constant 0 : i32
    %c0_i32_1 = arith.constant 0 : i32
    return %c0_i32, %c0_i32_0 : i32, i32
  }
  func.func @transform_2(%arg0: i32) -> (i32, i32) {
    %c0_i32 = arith.constant 0 : i32
    %c0_i32_0 = arith.constant 0 : i32
    %c0_i32_1 = arith.constant 0 : i32
    return %c0_i32, %c0_i32_0 : i32, i32
  }
  func.func @transform_3(%arg0: i32) -> (i32, i32) {
    %c0_i32 = arith.constant 0 : i32
    %c0_i32_0 = arith.constant 0 : i32
    %c0_i32_1 = arith.constant 0 : i32
    return %c0_i32, %c0_i32_0 : i32, i32
  }
  func.func @transform_4(%arg0: i32) -> (i32, i32) {
    %c0_i32 = arith.constant 0 : i32
    %c0_i32_0 = arith.constant 0 : i32
    %c0_i32_1 = arith.constant 0 : i32
    return %c0_i32, %c0_i32_0 : i32, i32
  }
  func.func @transform_5(%arg0: i32) -> (i32, i32) {
    %c0_i32 = arith.constant 0 : i32
    %c0_i32_0 = arith.constant 0 : i32
    return %arg0, %c0_i32 : i32, i32
  }
}

</mosaic_0001>

<llo_original>
// kernel: tpu_custom_call.1
$region0: #{tpu_custom_call.1}
  #allocation0 [shape = 'u32[]', space=smem, size = 0x4, offset = 0x4, fixed_abs, tag = 'smem constant byte address 0x4 - core index']
  #allocation1 [shape = 'u32[144,128]{1,0:T(1,128)}', space=vmem, size = 0x12000, scoped, tag = 'internal scratch']
  %s0 = inlined_call_operand.hbm [shape: f32[8,1000], index: 0, kind: input, shape index: {}]
  %s1 = inlined_call_operand.hbm [shape: bf16[1000,128], index: 1, kind: input, shape index: {}]
  %s2 = inlined_call_operand.vmem [shape: bf16[1,128], index: 2, kind: input, shape index: {}]
  %s3 = inlined_call_operand.hbm [shape: bf16[128,128], index: 3, kind: input, shape index: {}]
  %s4 = inlined_call_operand.vmem [shape: bf16[1,128], index: 4, kind: input, shape index: {}]
  %s5 = inlined_call_operand.hbm [shape: f32[8,128], index: 5, kind: output, shape index: {}]
  %s6 = sld [smem:[#allocation0]]
  $region42: #{tpu_custom_call.1} parent=0
    _
  %s8 = ssub.s32 1, %s6
  %s9 = scalar_select 0, %s8, %s6
  $region1: #{tpu_custom_call.1} parent=0
    #allocation2 [shape = 'u8[32768]{0}', space=vmem, size = 0x8000, scoped, tag = 'input window, operand 0, single buffered']
    #allocation3 [shape = 's32[1]{0}', space=sflag, size = 0x4, scoped, tag = 'scoped memory for tpu_custom_call.1']
    #allocation4 [shape = 's32[1]{0}', space=sflag, size = 0x4, scoped, tag = 'scoped memory for tpu_custom_call.1']
    #allocation5 [shape = 'u8[256000]{0}', space=vmem, size = 0x3e800, scoped, tag = 'input window, operand 1, single buffered']
    #allocation6 [shape = 's32[1]{0}', space=sflag, size = 0x4, scoped, tag = 'scoped memory for tpu_custom_call.1']
    #allocation7 [shape = 'u8[32768]{0}', space=vmem, size = 0x8000, scoped, tag = 'input window, operand 3, single buffered']
    #allocation8 [shape = 'u8[4096]{0}', space=vmem, size = 0x1000, scoped, tag = 'output window, operand 0, single buffered']
    %10 = vsyncpa [#allocation3], 0
    %11 = vsyncpa [#allocation6], 0
    %12 = vsyncpa [#allocation4], 0
    // Predicated region
    $region2: #{tpu_custom_call.1} parent=1 // pred_check
      _
    $region3: #{tpu_custom_call.1} parent=1 // pred_check_branch
      %14 = sbr.rel (0) target = $region5
    $region4: #{tpu_custom_call.1} parent=1 // pred_region
      %s16 = ssub.s32 1024, 1024
      %17 = vsyncadd [#allocation3], %s16
      %s19 = sshll.u32 [#allocation2], 4
      %s20 = int_to_ptr.vmem [resolvable:$true] %s19
      %22 = dma.hbm_to_vmem [thread:$0]  %s0, 1024, %s20, [#allocation3]
    $region5: #{tpu_custom_call.1} parent=1 // pred_fallthru
      _
    // Predicated region
    $region6: #{tpu_custom_call.1} parent=1 // pred_check
      _
    $region7: #{tpu_custom_call.1} parent=1 // pred_check_branch
      %24 = sbr.rel (0) target = $region9
    $region8: #{tpu_custom_call.1} parent=1 // pred_region
      %s26 = ssub.s32 8000, 8000
      %27 = vsyncadd [#allocation6], %s26
      %s28 = sshll.u32 [#allocation5], 4
      %s29 = int_to_ptr.vmem [resolvable:$true] %s28
      %34 = dma.hbm_to_vmem [thread:$0]  %s1, 8000, %s29, [#allocation6], 64, 64, 4
    $region9: #{tpu_custom_call.1} parent=1 // pred_fallthru
      _
    // Predicated region
    $region10: #{tpu_custom_call.1} parent=1 // pred_check
      _
    $region11: #{tpu_custom_call.1} parent=1 // pred_check_branch
      %36 = sbr.rel (0) target = $region13
    $region12: #{tpu_custom_call.1} parent=1 // pred_region
      _
    $region13: #{tpu_custom_call.1} parent=1 // pred_fallthru
      _
    // Predicated region
    $region14: #{tpu_custom_call.1} parent=1 // pred_check
      _
    $region15: #{tpu_custom_call.1} parent=1 // pred_check_branch
      %38 = sbr.rel (0) target = $region17
    $region16: #{tpu_custom_call.1} parent=1 // pred_region
      %s40 = ssub.s32 1024, 1024
      %41 = vsyncadd [#allocation6], %s40
      %s42 = sshll.u32 [#allocation7], 4
      %s43 = int_to_ptr.vmem [resolvable:$true] %s42
      %48 = dma.hbm_to_vmem [thread:$0]  %s3, 1024, %s43, [#allocation6], 64, 64, 4
    $region17: #{tpu_custom_call.1} parent=1 // pred_fallthru
      _
    // Predicated region
    $region18: #{tpu_custom_call.1} parent=1 // pred_check
      _
    $region19: #{tpu_custom_call.1} parent=1 // pred_check_branch
      %50 = sbr.rel (0) target = $region21
    $region20: #{tpu_custom_call.1} parent=1 // pred_region
      _
    $region21: #{tpu_custom_call.1} parent=1 // pred_fallthru
      _
    // Predicated region
    $region22: #{tpu_custom_call.1} parent=1 // pred_check
      _
    $region23: #{tpu_custom_call.1} parent=1 // pred_check_branch
      %52 = sbr.rel (0) target = $region25
    $region24: #{tpu_custom_call.1} parent=1 // pred_region
      %53 = dma.done [#allocation3], 1024
    $region25: #{tpu_custom_call.1} parent=1 // pred_fallthru
      _
    // Predicated region
    $region26: #{tpu_custom_call.1} parent=1 // pred_check
      _
    $region27: #{tpu_custom_call.1} parent=1 // pred_check_branch
      %55 = sbr.rel (0) target = $region29
    $region28: #{tpu_custom_call.1} parent=1 // pred_region
      %56 = dma.done [#allocation6], 8000
    $region29: #{tpu_custom_call.1} parent=1 // pred_fallthru
      _
    // Predicated region
    $region30: #{tpu_custom_call.1} parent=1 // pred_check
      _
    $region31: #{tpu_custom_call.1} parent=1 // pred_check_branch
      %58 = sbr.rel (0) target = $region33
    $region32: #{tpu_custom_call.1} parent=1 // pred_region
      %59 = dma.done [#allocation6], 1024
    $region33: #{tpu_custom_call.1} parent=1 // pred_fallthru
      _
    %v61 = vld [vmem:[#allocation2] sm:$0xff]
    %v62 = vld [vmem:[#allocation2 + $0x8] sm:$0xff]
    %v63 = vld [vmem:[#allocation2 + $0x10] sm:$0xff]
    %v64 = vld [vmem:[#allocation2 + $0x18] sm:$0xff]
    %v65 = vld [vmem:[#allocation2 + $0x20] sm:$0xff]
    %v66 = vld [vmem:[#allocation2 + $0x28] sm:$0xff]
    %v67 = vld [vmem:[#allocation2 + $0x30] sm:$0xff]
    %v68 = vld [vmem:[#allocation2 + $0x38] sm:$0xff]
    %v69 = vpack.c.bf16 %v61, %v61
    %v70 = vpack.c.bf16 %v62, %v62
    %v71 = vpack.c.bf16 %v63, %v63
    %v72 = vpack.c.bf16 %v64, %v64
    %v73 = vpack.c.bf16 %v65, %v65
    %v74 = vpack.c.bf16 %v66, %v66
    %v75 = vpack.c.bf16 %v67, %v67
    %v76 = vpack.c.bf16 %v68, %v68
    %v77 = vld [vmem:[#allocation5] sm:$0xf]
    %v78 = vld [vmem:[#allocation5 + $0x4] sm:$0xf]
    %v79 = vld [vmem:[#allocation5 + $0x8] sm:$0xf]
    %v80 = vld [vmem:[#allocation5 + $0xc] sm:$0xf]
    %v81 = vld [vmem:[#allocation5 + $0x10] sm:$0xf]
    %v82 = vld [vmem:[#allocation5 + $0x14] sm:$0xf]
    %v83 = vld [vmem:[#allocation5 + $0x18] sm:$0xf]
    %v84 = vld [vmem:[#allocation5 + $0x1c] sm:$0xf]
    %v85 = vld [vmem:[#allocation5 + $0x20] sm:$0xf]
    %v86 = vld [vmem:[#allocation5 + $0x24] sm:$0xf]
    %v87 = vld [vmem:[#allocation5 + $0x28] sm:$0xf]
    %v88 = vld [vmem:[#allocation5 + $0x2c] sm:$0xf]
    %v89 = vld [vmem:[#allocation5 + $0x30] sm:$0xf]
    %v90 = vld [vmem:[#allocation5 + $0x34] sm:$0xf]
    %v91 = vld [vmem:[#allocation5 + $0x38] sm:$0xf]
    %v92 = vld [vmem:[#allocation5 + $0x3c] sm:$0xf]
    %v93 = vld [vmem:[#allocation5 + $0x40] sm:$0xf]
    %v94 = vld [vmem:[#allocation5 + $0x44] sm:$0xf]
    %v95 = vld [vmem:[#allocation5 + $0x48] sm:$0xf]
    %v96 = vld [vmem:[#allocation5 + $0x4c] sm:$0xf]
    %v97 = vld [vmem:[#allocation5 + $0x50] sm:$0xf]
    %v98 = vld [vmem:[#allocation5 + $0x54] sm:$0xf]
    %v99 = vld [vmem:[#allocation5 + $0x58] sm:$0xf]
    %v100 = vld [vmem:[#allocation5 + $0x5c] sm:$0xf]
    %v101 = vld [vmem:[#allocation5 + $0x60] sm:$0xf]
    %v102 = vld [vmem:[#allocation5 + $0x64] sm:$0xf]
    %v103 = vld [vmem:[#allocation5 + $0x68] sm:$0xf]
    %v104 = vld [vmem:[#allocation5 + $0x6c] sm:$0xf]
    %v105 = vld [vmem:[#allocation5 + $0x70] sm:$0xf]
    %v106 = vld [vmem:[#allocation5 + $0x74] sm:$0xf]
    %v107 = vld [vmem:[#allocation5 + $0x78] sm:$0xf]
    %v108 = vld [vmem:[#allocation5 + $0x7c] sm:$0xf]
    %v109 = vld [vmem:[#allocation5 + $0x80] sm:$0xf]
    %v110 = vld [vmem:[#allocation5 + $0x84] sm:$0xf]
    %v111 = vld [vmem:[#allocation5 + $0x88] sm:$0xf]
    %v112 = vld [vmem:[#allocation5 + $0x8c] sm:$0xf]
    %v113 = vld [vmem:[#allocation5 + $0x90] sm:$0xf]
    %v114 = vld [vmem:[#allocation5 + $0x94] sm:$0xf]
    %v115 = vld [vmem:[#allocation5 + $0x98] sm:$0xf]
    %v116 = vld [vmem:[#allocation5 + $0x9c] sm:$0xf]
    %v117 = vld [vmem:[#allocation5 + $0xa0] sm:$0xf]
    %v118 = vld [vmem:[#allocation5 + $0xa4] sm:$0xf]
    %v119 = vld [vmem:[#allocation5 + $0xa8] sm:$0xf]
    %v120 = vld [vmem:[#allocation5 + $0xac] sm:$0xf]
    %v121 = vld [vmem:[#allocation5 + $0xb0] sm:$0xf]
    %v122 = vld [vmem:[#allocation5 + $0xb4] sm:$0xf]
    %v123 = vld [vmem:[#allocation5 + $0xb8] sm:$0xf]
    %v124 = vld [vmem:[#allocation5 + $0xbc] sm:$0xf]
    %v125 = vld [vmem:[#allocation5 + $0xc0] sm:$0xf]
    %v126 = vld [vmem:[#allocation5 + $0xc4] sm:$0xf]
    %v127 = vld [vmem:[#allocation5 + $0xc8] sm:$0xf]
    %v128 = vld [vmem:[#allocation5 + $0xcc] sm:$0xf]
    %v129 = vld [vmem:[#allocation5 + $0xd0] sm:$0xf]
    %v130 = vld [vmem:[#allocation5 + $0xd4] sm:$0xf]
    %v131 = vld [vmem:[#allocation5 + $0xd8] sm:$0xf]
    %v132 = vld [vmem:[#allocation5 + $0xdc] sm:$0xf]
    %v133 = vld [vmem:[#allocation5 + $0xe0] sm:$0xf]
    %v134 = vld [vmem:[#allocation5 + $0xe4] sm:$0xf]
    %v135 = vld [vmem:[#allocation5 + $0xe8] sm:$0xf]
    %v136 = vld [vmem:[#allocation5 + $0xec] sm:$0xf]
    %v137 = vld [vmem:[#allocation5 + $0xf0] sm:$0xf]
    %v138 = vld [vmem:[#allocation5 + $0xf4] sm:$0xf]
    %v139 = vld [vmem:[#allocation5 + $0xf8] sm:$0xf]
    %v140 = vld [vmem:[#allocation5 + $0xfc] sm:$0xf]
    %v141 = vld [vmem:[#allocation5 + $0x100] sm:$0xf]
    %v142 = vld [vmem:[#allocation5 + $0x104] sm:$0xf]
    %v143 = vld [vmem:[#allocation5 + $0x108] sm:$0xf]
    %v144 = vld [vmem:[#allocation5 + $0x10c] sm:$0xf]
    %v145 = vld [vmem:[#allocation5 + $0x110] sm:$0xf]
    %v146 = vld [vmem:[#allocation5 + $0x114] sm:$0xf]
    %v147 = vld [vmem:[#allocation5 + $0x118] sm:$0xf]
    %v148 = vld [vmem:[#allocation5 + $0x11c] sm:$0xf]
    %v149 = vld [vmem:[#allocation5 + $0x120] sm:$0xf]
    %v150 = vld [vmem:[#allocation5 + $0x124] sm:$0xf]
    %v151 = vld [vmem:[#allocation5 + $0x128] sm:$0xf]
    %v152 = vld [vmem:[#allocation5 + $0x12c] sm:$0xf]
    %v153 = vld [vmem:[#allocation5 + $0x130] sm:$0xf]
    %v154 = vld [vmem:[#allocation5 + $0x134] sm:$0xf]
    %v155 = vld [vmem:[#allocation5 + $0x138] sm:$0xf]
    %v156 = vld [vmem:[#allocation5 + $0x13c] sm:$0xf]
    %v157 = vld [vmem:[#allocation5 + $0x140] sm:$0xf]
    %v158 = vld [vmem:[#allocation5 + $0x144] sm:$0xf]
    %v159 = vld [vmem:[#allocation5 + $0x148] sm:$0xf]
    %v160 = vld [vmem:[#allocation5 + $0x14c] sm:$0xf]
    %v161 = vld [vmem:[#allocation5 + $0x150] sm:$0xf]
    %v162 = vld [vmem:[#allocation5 + $0x154] sm:$0xf]
    %v163 = vld [vmem:[#allocation5 + $0x158] sm:$0xf]
    %v164 = vld [vmem:[#allocation5 + $0x15c] sm:$0xf]
    %v165 = vld [vmem:[#allocation5 + $0x160] sm:$0xf]
    %v166 = vld [vmem:[#allocation5 + $0x164] sm:$0xf]
    %v167 = vld [vmem:[#allocation5 + $0x168] sm:$0xf]
    %v168 = vld [vmem:[#allocation5 + $0x16c] sm:$0xf]
    %v169 = vld [vmem:[#allocation5 + $0x170] sm:$0xf]
    %v170 = vld [vmem:[#allocation5 + $0x174] sm:$0xf]
    %v171 = vld [vmem:[#allocation5 + $0x178] sm:$0xf]
    %v172 = vld [vmem:[#allocation5 + $0x17c] sm:$0xf]
    %v173 = vld [vmem:[#allocation5 + $0x180] sm:$0xf]
    %v174 = vld [vmem:[#allocation5 + $0x184] sm:$0xf]
    %v175 = vld [vmem:[#allocation5 + $0x188] sm:$0xf]
    %v176 = vld [vmem:[#allocation5 + $0x18c] sm:$0xf]
    %v177 = vld [vmem:[#allocation5 + $0x190] sm:$0xf]
    %v178 = vld [vmem:[#allocation5 + $0x194] sm:$0xf]
    %v179 = vld [vmem:[#allocation5 + $0x198] sm:$0xf]
    %v180 = vld [vmem:[#allocation5 + $0x19c] sm:$0xf]
    %v181 = vld [vmem:[#allocation5 + $0x1a0] sm:$0xf]
    %v182 = vld [vmem:[#allocation5 + $0x1a4] sm:$0xf]
    %v183 = vld [vmem:[#allocation5 + $0x1a8] sm:$0xf]
    %v184 = vld [vmem:[#allocation5 + $0x1ac] sm:$0xf]
    %v185 = vld [vmem:[#allocation5 + $0x1b0] sm:$0xf]
    %v186 = vld [vmem:[#allocation5 + $0x1b4] sm:$0xf]
    %v187 = vld [vmem:[#allocation5 + $0x1b8] sm:$0xf]
    %v188 = vld [vmem:[#allocation5 + $0x1bc] sm:$0xf]
    %v189 = vld [vmem:[#allocation5 + $0x1c0] sm:$0xf]
    %v190 = vld [vmem:[#allocation5 + $0x1c4] sm:$0xf]
    %v191 = vld [vmem:[#allocation5 + $0x1c8] sm:$0xf]
    %v192 = vld [vmem:[#allocation5 + $0x1cc] sm:$0xf]
    %v193 = vld [vmem:[#allocation5 + $0x1d0] sm:$0xf]
    %v194 = vld [vmem:[#allocation5 + $0x1d4] sm:$0xf]
    %v195 = vld [vmem:[#allocation5 + $0x1d8] sm:$0xf]
    %v196 = vld [vmem:[#allocation5 + $0x1dc] sm:$0xf]
    %v197 = vld [vmem:[#allocation5 + $0x1e0] sm:$0xf]
    %v198 = vld [vmem:[#allocation5 + $0x1e4] sm:$0xf]
    %v199 = vld [vmem:[#allocation5 + $0x1e8] sm:$0xf]
    %v200 = vld [vmem:[#allocation5 + $0x1ec] sm:$0xf]
    %v201 = vld [vmem:[#allocation5 + $0x1f0] sm:$0xf]
    %v202 = vld [vmem:[%s2] sm:$0x1]
    %v203 = vunpack.c.l.bf16 %v202
    %v204 = vlaneseq
    %v205 = vshrl.u32 %v204, 7
    %v206 = vsub.s32 0, %v205
    %v207 = vrot.slane %v203, %v206
    %v333 = vunpack.c.l.b16 %v77
    %v334 = vunpack.c.l.b16 %v78
    %v335 = vunpack.c.l.b16 %v79
    %v336 = vunpack.c.l.b16 %v80
    %v337 = vunpack.c.l.b16 %v81
    %v338 = vunpack.c.l.b16 %v82
    %v339 = vunpack.c.l.b16 %v83
    %v340 = vunpack.c.l.b16 %v84
    %v341 = vunpack.c.l.b16 %v85
    %v342 = vunpack.c.l.b16 %v86
    %v343 = vunpack.c.l.b16 %v87
    %v344 = vunpack.c.l.b16 %v88
    %v345 = vunpack.c.l.b16 %v89
    %v346 = vunpack.c.l.b16 %v90
    %v347 = vunpack.c.l.b16 %v91
    %v348 = vunpack.c.l.b16 %v92
    %v349 = vunpack.c.l.b16 %v93
    %v350 = vunpack.c.l.b16 %v94
    %v351 = vunpack.c.l.b16 %v95
    %v352 = vunpack.c.l.b16 %v96
    %v353 = vunpack.c.l.b16 %v97
    %v354 = vunpack.c.l.b16 %v98
    %v355 = vunpack.c.l.b16 %v99
    %v356 = vunpack.c.l.b16 %v100
    %v357 = vunpack.c.l.b16 %v101
    %v358 = vunpack.c.l.b16 %v102
    %v359 = vunpack.c.l.b16 %v103
    %v360 = vunpack.c.l.b16 %v104
    %v361 = vunpack.c.l.b16 %v105
    %v362 = vunpack.c.l.b16 %v106
    %v363 = vunpack.c.l.b16 %v107
    %v364 = vunpack.c.l.b16 %v108
    %v365 = vunpack.c.l.b16 %v109
    %v366 = vunpack.c.l.b16 %v110
    %v367 = vunpack.c.l.b16 %v111
    %v368 = vunpack.c.l.b16 %v112
    %v369 = vunpack.c.l.b16 %v113
    %v370 = vunpack.c.l.b16 %v114
    %v371 = vunpack.c.l.b16 %v115
    %v372 = vunpack.c.l.b16 %v116
    %v373 = vunpack.c.l.b16 %v117
    %v374 = vunpack.c.l.b16 %v118
    %v375 = vunpack.c.l.b16 %v119
    %v376 = vunpack.c.l.b16 %v120
    %v377 = vunpack.c.l.b16 %v121
    %v378 = vunpack.c.l.b16 %v122
    %v379 = vunpack.c.l.b16 %v123
    %v380 = vunpack.c.l.b16 %v124
    %v381 = vunpack.c.l.b16 %v125
    %v382 = vunpack.c.l.b16 %v126
    %v383 = vunpack.c.l.b16 %v127
    %v384 = vunpack.c.l.b16 %v128
    %v385 = vunpack.c.l.b16 %v129
    %v386 = vunpack.c.l.b16 %v130
    %v387 = vunpack.c.l.b16 %v131
    %v388 = vunpack.c.l.b16 %v132
    %v389 = vunpack.c.l.b16 %v133
    %v390 = vunpack.c.l.b16 %v134
    %v391 = vunpack.c.l.b16 %v135
    %v392 = vunpack.c.l.b16 %v136
    %v393 = vunpack.c.l.b16 %v137
    %v394 = vunpack.c.l.b16 %v138
    %v395 = vunpack.c.l.b16 %v139
    %v396 = vunpack.c.l.b16 %v140
    %v397 = vunpack.c.l.b16 %v141
    %v398 = vunpack.c.l.b16 %v142
    %v399 = vunpack.c.l.b16 %v143
    %v400 = vunpack.c.l.b16 %v144
    %v401 = vunpack.c.l.b16 %v145
    %v402 = vunpack.c.l.b16 %v146
    %v403 = vunpack.c.l.b16 %v147
    %v404 = vunpack.c.l.b16 %v148
    %v405 = vunpack.c.l.b16 %v149
    %v406 = vunpack.c.l.b16 %v150
    %v407 = vunpack.c.l.b16 %v151
    %v408 = vunpack.c.l.b16 %v152
    %v409 = vunpack.c.l.b16 %v153
    %v410 = vunpack.c.l.b16 %v154
    %v411 = vunpack.c.l.b16 %v155
    %v412 = vunpack.c.l.b16 %v156
    %v413 = vunpack.c.l.b16 %v157
    %v414 = vunpack.c.l.b16 %v158
    %v415 = vunpack.c.l.b16 %v159
    %v416 = vunpack.c.l.b16 %v160
    %v417 = vunpack.c.l.b16 %v161
    %v418 = vunpack.c.l.b16 %v162
    %v419 = vunpack.c.l.b16 %v163
    %v420 = vunpack.c.l.b16 %v164
    %v421 = vunpack.c.l.b16 %v165
    %v422 = vunpack.c.l.b16 %v166
    %v423 = vunpack.c.l.b16 %v167
    %v424 = vunpack.c.l.b16 %v168
    %v425 = vunpack.c.l.b16 %v169
    %v426 = vunpack.c.l.b16 %v170
    %v427 = vunpack.c.l.b16 %v171
    %v428 = vunpack.c.l.b16 %v172
    %v429 = vunpack.c.l.b16 %v173
    %v430 = vunpack.c.l.b16 %v174
    %v431 = vunpack.c.l.b16 %v175
    %v432 = vunpack.c.l.b16 %v176
    %v433 = vunpack.c.l.b16 %v177
    %v434 = vunpack.c.l.b16 %v178
    %v435 = vunpack.c.l.b16 %v179
    %v436 = vunpack.c.l.b16 %v180
    %v437 = vunpack.c.l.b16 %v181
    %v438 = vunpack.c.l.b16 %v182
    %v439 = vunpack.c.l.b16 %v183
    %v440 = vunpack.c.l.b16 %v184
    %v441 = vunpack.c.l.b16 %v185
    %v442 = vunpack.c.l.b16 %v186
    %v443 = vunpack.c.l.b16 %v187
    %v444 = vunpack.c.l.b16 %v188
    %v445 = vunpack.c.l.b16 %v189
    %v446 = vunpack.c.l.b16 %v190
    %v447 = vunpack.c.l.b16 %v191
    %v448 = vunpack.c.l.b16 %v192
    %v449 = vunpack.c.l.b16 %v193
    %v450 = vunpack.c.l.b16 %v194
    %v451 = vunpack.c.l.b16 %v195
    %v452 = vunpack.c.l.b16 %v196
    %v453 = vunpack.c.l.b16 %v197
    %v454 = vunpack.c.l.b16 %v198
    %v455 = vunpack.c.l.b16 %v199
    %v456 = vunpack.c.l.b16 %v200
    %v457 = vunpack.c.l.b16 %v201
    %v458 = vpack.c.b16 %v334, %v333
    %v459 = vpack.c.b16 %v336, %v335
    %v460 = vpack.c.b16 %v338, %v337
    %v461 = vpack.c.b16 %v340, %v339
    %v462 = vpack.c.b16 %v342, %v341
    %v463 = vpack.c.b16 %v344, %v343
    %v464 = vpack.c.b16 %v346, %v345
    %v465 = vpack.c.b16 %v348, %v347
    %v466 = vpack.c.b16 %v350, %v349
    %v467 = vpack.c.b16 %v352, %v351
    %v468 = vpack.c.b16 %v354, %v353
    %v469 = vpack.c.b16 %v356, %v355
    %v470 = vpack.c.b16 %v358, %v357
    %v471 = vpack.c.b16 %v360, %v359
    %v472 = vpack.c.b16 %v362, %v361
    %v473 = vpack.c.b16 %v364, %v363
    %v474 = vpack.c.b16 %v366, %v365
    %v475 = vpack.c.b16 %v368, %v367
    %v476 = vpack.c.b16 %v370, %v369
    %v477 = vpack.c.b16 %v372, %v371
    %v478 = vpack.c.b16 %v374, %v373
    %v479 = vpack.c.b16 %v376, %v375
    %v480 = vpack.c.b16 %v378, %v377
    %v481 = vpack.c.b16 %v380, %v379
    %v482 = vpack.c.b16 %v382, %v381
    %v483 = vpack.c.b16 %v384, %v383
    %v484 = vpack.c.b16 %v386, %v385
    %v485 = vpack.c.b16 %v388, %v387
    %v486 = vpack.c.b16 %v390, %v389
    %v487 = vpack.c.b16 %v392, %v391
    %v488 = vpack.c.b16 %v394, %v393
    %v489 = vpack.c.b16 %v396, %v395
    %v490 = vpack.c.b16 %v398, %v397
    %v491 = vpack.c.b16 %v400, %v399
    %v492 = vpack.c.b16 %v402, %v401
    %v493 = vpack.c.b16 %v404, %v403
    %v494 = vpack.c.b16 %v406, %v405
    %v495 = vpack.c.b16 %v408, %v407
    %v496 = vpack.c.b16 %v410, %v409
    %v497 = vpack.c.b16 %v412, %v411
    %v498 = vpack.c.b16 %v414, %v413
    %v499 = vpack.c.b16 %v416, %v415
    %v500 = vpack.c.b16 %v418, %v417
    %v501 = vpack.c.b16 %v420, %v419
    %v502 = vpack.c.b16 %v422, %v421
    %v503 = vpack.c.b16 %v424, %v423
    %v504 = vpack.c.b16 %v426, %v425
    %v505 = vpack.c.b16 %v428, %v427
    %v506 = vpack.c.b16 %v430, %v429
    %v507 = vpack.c.b16 %v432, %v431
    %v508 = vpack.c.b16 %v434, %v433
    %v509 = vpack.c.b16 %v436, %v435
    %v510 = vpack.c.b16 %v438, %v437
    %v511 = vpack.c.b16 %v440, %v439
    %v512 = vpack.c.b16 %v442, %v441
    %v513 = vpack.c.b16 %v444, %v443
    %v514 = vpack.c.b16 %v446, %v445
    %v515 = vpack.c.b16 %v448, %v447
    %v516 = vpack.c.b16 %v450, %v449
    %v517 = vpack.c.b16 %v452, %v451
    %v518 = vpack.c.b16 %v454, %v453
    %v519 = vpack.c.b16 %v456, %v455
    %v520 = vpack.c.b16 %v457, %v457
    %vm583 = vcmask 850944
    %v585 = vsel %vm583, %v76, 0
    %vm587 = vcmask 1043456
    %v589 = vsel %vm587, %v520, 0
    %591 = vmatprep.subr.bf16.mxu0 0
    %592 = vmatpush1.bf16.msra.mxu0 %v465
    %593 = vmatprep.subr.bf16.mxu0 0
    %594 = vmatpush1.bf16.msra.mxu0 %v464
    %595 = vmatprep.subr.bf16.mxu0 0
    %596 = vmatpush1.bf16.msra.mxu0 %v463
    %597 = vmatprep.subr.bf16.mxu0 0
    %598 = vmatpush1.bf16.msra.mxu0 %v462
    %599 = vmatprep.subr.bf16.mxu0 0
    %600 = vmatpush1.bf16.msra.mxu0 %v461
    %601 = vmatprep.subr.bf16.mxu0 0
    %602 = vmatpush1.bf16.msra.mxu0 %v460
    %603 = vmatprep.subr.bf16.mxu0 0
    %604 = vmatpush1.bf16.msra.mxu0 %v459
    %605 = vmatprep.subr.bf16.mxu0 0
    %606 = vmatpush1.bf16.msra.mxu0 %v458
    %607 = vmatprep.subr.bf16.mxu0 0
    %608 = vmatpush2.bf16.msra.mxu0 %v473
    %609 = vmatprep.subr.bf16.mxu0 0
    %610 = vmatpush2.bf16.msra.mxu0 %v472
    %611 = vmatprep.subr.bf16.mxu0 0
    %612 = vmatpush2.bf16.msra.mxu0 %v471
    %613 = vmatprep.subr.bf16.mxu0 0
    %614 = vmatpush2.bf16.msra.mxu0 %v470
    %615 = vmatprep.subr.bf16.mxu0 0
    %616 = vmatpush2.bf16.msra.mxu0 %v469
    %617 = vmatprep.subr.bf16.mxu0 0
    %618 = vmatpush2.bf16.msra.mxu0 %v468
    %619 = vmatprep.subr.bf16.mxu0 0
    %620 = vmatpush2.bf16.msra.mxu0 %v467
    %621 = vmatprep.subr.bf16.mxu0 0
    %622 = vmatpush2.bf16.msra.mxu0 %v466
    %623 = vmatprep.mubr.bf16.mxu0 %v70
    %624 = vmatmul.mubr.bf16.gmra.mxu0 %v69
    %v625 = vpop.f32.mrf.mxu0
    %v626 = vadd.f32 %v207, %v625
    %v627 = vpop.f32.mrf.mxu0
    %v628 = vpop.f32.mrf.mxu0
    %v629 = vpop.f32.mrf.mxu0
    %630 = vdwg.mxu0
    %631 = vmatprep.subr.bf16.mxu0 0
    %632 = vmatpush1.bf16.msra.mxu0 %v481
    %633 = vmatprep.subr.bf16.mxu0 0
    %634 = vmatpush1.bf16.msra.mxu0 %v480
    %635 = vmatprep.subr.bf16.mxu0 0
    %636 = vmatpush1.bf16.msra.mxu0 %v479
    %637 = vmatprep.subr.bf16.mxu0 0
    %638 = vmatpush1.bf16.msra.mxu0 %v478
    %639 = vmatprep.subr.bf16.mxu0 0
    %640 = vmatpush1.bf16.msra.mxu0 %v477
    %641 = vmatprep.subr.bf16.mxu0 0
    %642 = vmatpush1.bf16.msra.mxu0 %v476
    %643 = vmatprep.subr.bf16.mxu0 0
    %644 = vmatpush1.bf16.msra.mxu0 %v475
    %645 = vmatprep.subr.bf16.mxu0 0
    %646 = vmatpush1.bf16.msra.mxu0 %v474
    %647 = vmatprep.subr.bf16.mxu0 0
    %648 = vmatpush2.bf16.msra.mxu0 %v489
    %649 = vmatprep.subr.bf16.mxu0 0
    %650 = vmatpush2.bf16.msra.mxu0 %v488
    %651 = vmatprep.subr.bf16.mxu0 0
    %652 = vmatpush2.bf16.msra.mxu0 %v487
    %653 = vmatprep.subr.bf16.mxu0 0
    %654 = vmatpush2.bf16.msra.mxu0 %v486
    %655 = vmatprep.subr.bf16.mxu0 0
    %656 = vmatpush2.bf16.msra.mxu0 %v485
    %657 = vmatprep.subr.bf16.mxu0 0
    %658 = vmatpush2.bf16.msra.mxu0 %v484
    %659 = vmatprep.subr.bf16.mxu0 0
    %660 = vmatpush2.bf16.msra.mxu0 %v483
    %661 = vmatprep.subr.bf16.mxu0 0
    %662 = vmatpush2.bf16.msra.mxu0 %v482
    %663 = vmatprep.mubr.bf16.mxu0 %v72
    %664 = vmatmul.mubr.bf16.gmra.mxu0 %v71
    %v665 = vpop.f32.mrf.mxu0
    %v666 = vadd.f32 %v626, %v665
    %v667 = vpop.f32.mrf.mxu0
    %v668 = vpop.f32.mrf.mxu0
    %v669 = vpop.f32.mrf.mxu0
    %670 = vdwg.mxu0
    %671 = vmatprep.subr.bf16.mxu0 0
    %672 = vmatpush1.bf16.msra.mxu0 %v497
    %673 = vmatprep.subr.bf16.mxu0 0
    %674 = vmatpush1.bf16.msra.mxu0 %v496
    %675 = vmatprep.subr.bf16.mxu0 0
    %676 = vmatpush1.bf16.msra.mxu0 %v495
    %677 = vmatprep.subr.bf16.mxu0 0
    %678 = vmatpush1.bf16.msra.mxu0 %v494
    %679 = vmatprep.subr.bf16.mxu0 0
    %680 = vmatpush1.bf16.msra.mxu0 %v493
    %681 = vmatprep.subr.bf16.mxu0 0
    %682 = vmatpush1.bf16.msra.mxu0 %v492
    %683 = vmatprep.subr.bf16.mxu0 0
    %684 = vmatpush1.bf16.msra.mxu0 %v491
    %685 = vmatprep.subr.bf16.mxu0 0
    %686 = vmatpush1.bf16.msra.mxu0 %v490
    %687 = vmatprep.subr.bf16.mxu0 0
    %688 = vmatpush2.bf16.msra.mxu0 %v505
    %689 = vmatprep.subr.bf16.mxu0 0
    %690 = vmatpush2.bf16.msra.mxu0 %v504
    %691 = vmatprep.subr.bf16.mxu0 0
    %692 = vmatpush2.bf16.msra.mxu0 %v503
    %693 = vmatprep.subr.bf16.mxu0 0
    %694 = vmatpush2.bf16.msra.mxu0 %v502
    %695 = vmatprep.subr.bf16.mxu0 0
    %696 = vmatpush2.bf16.msra.mxu0 %v501
    %697 = vmatprep.subr.bf16.mxu0 0
    %698 = vmatpush2.bf16.msra.mxu0 %v500
    %699 = vmatprep.subr.bf16.mxu0 0
    %700 = vmatpush2.bf16.msra.mxu0 %v499
    %701 = vmatprep.subr.bf16.mxu0 0
    %702 = vmatpush2.bf16.msra.mxu0 %v498
    %703 = vmatprep.mubr.bf16.mxu0 %v74
    %704 = vmatmul.mubr.bf16.gmra.mxu0 %v73
    %v705 = vpop.f32.mrf.mxu0
    %v706 = vadd.f32 %v666, %v705
    %v707 = vpop.f32.mrf.mxu0
    %v708 = vpop.f32.mrf.mxu0
    %v709 = vpop.f32.mrf.mxu0
    %710 = vdwg.mxu0
    %711 = vmatprep.subr.bf16.mxu0 0
    %712 = vmatpush1.bf16.msra.mxu0 %v513
    %713 = vmatprep.subr.bf16.mxu0 0
    %714 = vmatpush1.bf16.msra.mxu0 %v512
    %715 = vmatprep.subr.bf16.mxu0 0
    %716 = vmatpush1.bf16.msra.mxu0 %v511
    %717 = vmatprep.subr.bf16.mxu0 0
    %718 = vmatpush1.bf16.msra.mxu0 %v510
    %719 = vmatprep.subr.bf16.mxu0 0
    %720 = vmatpush1.bf16.msra.mxu0 %v509
    %721 = vmatprep.subr.bf16.mxu0 0
    %722 = vmatpush1.bf16.msra.mxu0 %v508
    %723 = vmatprep.subr.bf16.mxu0 0
    %724 = vmatpush1.bf16.msra.mxu0 %v507
    %725 = vmatprep.subr.bf16.mxu0 0
    %726 = vmatpush1.bf16.msra.mxu0 %v506
    %727 = vmatprep.subr.bf16.mxu0 0
    %728 = vmatpush2.bf16.msra.mxu0 0
    %729 = vmatprep.subr.bf16.mxu0 0
    %730 = vmatpush2.bf16.msra.mxu0 %v589
    %731 = vmatprep.subr.bf16.mxu0 0
    %732 = vmatpush2.bf16.msra.mxu0 %v519
    %733 = vmatprep.subr.bf16.mxu0 0
    %734 = vmatpush2.bf16.msra.mxu0 %v518
    %735 = vmatprep.subr.bf16.mxu0 0
    %736 = vmatpush2.bf16.msra.mxu0 %v517
    %737 = vmatprep.subr.bf16.mxu0 0
    %738 = vmatpush2.bf16.msra.mxu0 %v516
    %739 = vmatprep.subr.bf16.mxu0 0
    %740 = vmatpush2.bf16.msra.mxu0 %v515
    %741 = vmatprep.subr.bf16.mxu0 0
    %742 = vmatpush2.bf16.msra.mxu0 %v514
    %743 = vmatprep.mubr.bf16.mxu0 %v585
    %744 = vmatmul.mubr.bf16.gmra.mxu0 %v75
    %v745 = vpop.f32.mrf.mxu0
    %v746 = vadd.f32 %v706, %v745
    %v747 = vpop.f32.mrf.mxu0
    %v748 = vpop.f32.mrf.mxu0
    %v749 = vpop.f32.mrf.mxu0
    %750 = vdwg.mxu0
    %v751 = vmax.f32 %v746, 0.0
    %v752 = vpack.c.bf16 %v751, %v751
    %v753 = vld [vmem:[#allocation7] sm:$0xf]
    %v754 = vld [vmem:[#allocation7 + $0x4] sm:$0xf]
    %v755 = vld [vmem:[#allocation7 + $0x8] sm:$0xf]
    %v756 = vld [vmem:[#allocation7 + $0xc] sm:$0xf]
    %v757 = vld [vmem:[#allocation7 + $0x10] sm:$0xf]
    %v758 = vld [vmem:[#allocation7 + $0x14] sm:$0xf]
    %v759 = vld [vmem:[#allocation7 + $0x18] sm:$0xf]
    %v760 = vld [vmem:[#allocation7 + $0x1c] sm:$0xf]
    %v761 = vld [vmem:[#allocation7 + $0x20] sm:$0xf]
    %v762 = vld [vmem:[#allocation7 + $0x24] sm:$0xf]
    %v763 = vld [vmem:[#allocation7 + $0x28] sm:$0xf]
    %v764 = vld [vmem:[#allocation7 + $0x2c] sm:$0xf]
    %v765 = vld [vmem:[#allocation7 + $0x30] sm:$0xf]
    %v766 = vld [vmem:[#allocation7 + $0x34] sm:$0xf]
    %v767 = vld [vmem:[#allocation7 + $0x38] sm:$0xf]
    %v768 = vld [vmem:[#allocation7 + $0x3c] sm:$0xf]
    %v769 = vld [vmem:[%s4] sm:$0x1]
    %v770 = vunpack.c.l.bf16 %v769
    %v771 = vlaneseq
    %v772 = vshrl.u32 %v771, 7
    %v773 = vsub.s32 0, %v772
    %v774 = vrot.slane %v770, %v773
    %v791 = vunpack.c.l.b16 %v753
    %v792 = vunpack.c.l.b16 %v754
    %v793 = vunpack.c.l.b16 %v755
    %v794 = vunpack.c.l.b16 %v756
    %v795 = vunpack.c.l.b16 %v757
    %v796 = vunpack.c.l.b16 %v758
    %v797 = vunpack.c.l.b16 %v759
    %v798 = vunpack.c.l.b16 %v760
    %v799 = vunpack.c.l.b16 %v761
    %v800 = vunpack.c.l.b16 %v762
    %v801 = vunpack.c.l.b16 %v763
    %v802 = vunpack.c.l.b16 %v764
    %v803 = vunpack.c.l.b16 %v765
    %v804 = vunpack.c.l.b16 %v766
    %v805 = vunpack.c.l.b16 %v767
    %v806 = vunpack.c.l.b16 %v768
    %v807 = vpack.c.b16 %v792, %v791
    %v808 = vpack.c.b16 %v794, %v793
    %v809 = vpack.c.b16 %v796, %v795
    %v810 = vpack.c.b16 %v798, %v797
    %v811 = vpack.c.b16 %v800, %v799
    %v812 = vpack.c.b16 %v802, %v801
    %v813 = vpack.c.b16 %v804, %v803
    %v814 = vpack.c.b16 %v806, %v805
    %823 = vmatprep.subr.bf16.mxu0 0
    %824 = vmatpush1.bf16.msra.mxu0 %v814
    %825 = vmatprep.subr.bf16.mxu0 0
    %826 = vmatpush1.bf16.msra.mxu0 %v813
    %827 = vmatprep.subr.bf16.mxu0 0
    %828 = vmatpush1.bf16.msra.mxu0 %v812
    %829 = vmatprep.subr.bf16.mxu0 0
    %830 = vmatpush1.bf16.msra.mxu0 %v811
    %831 = vmatprep.subr.bf16.mxu0 0
    %832 = vmatpush1.bf16.msra.mxu0 %v810
    %833 = vmatprep.subr.bf16.mxu0 0
    %834 = vmatpush1.bf16.msra.mxu0 %v809
    %835 = vmatprep.subr.bf16.mxu0 0
    %836 = vmatpush1.bf16.msra.mxu0 %v808
    %837 = vmatprep.subr.bf16.mxu0 0
    %838 = vmatpush1.bf16.msra.mxu0 %v807
    %839 = vmatprep.subr.bf16.mxu0 0
    %840 = vmatpush2.bf16.msra.mxu0 0
    %841 = vmatprep.subr.bf16.mxu0 0
    %842 = vmatpush2.bf16.msra.mxu0 0
    %843 = vmatprep.subr.bf16.mxu0 0
    %844 = vmatpush2.bf16.msra.mxu0 0
    %845 = vmatprep.subr.bf16.mxu0 0
    %846 = vmatpush2.bf16.msra.mxu0 0
    %847 = vmatprep.subr.bf16.mxu0 0
    %848 = vmatpush2.bf16.msra.mxu0 0
    %849 = vmatprep.subr.bf16.mxu0 0
    %850 = vmatpush2.bf16.msra.mxu0 0
    %851 = vmatprep.subr.bf16.mxu0 0
    %852 = vmatpush2.bf16.msra.mxu0 0
    %853 = vmatprep.subr.bf16.mxu0 0
    %854 = vmatpush2.bf16.msra.mxu0 0
    %855 = vmatprep.mubr.bf16.mxu0 0
    %856 = vmatmul.mubr.bf16.gmra.mxu0 %v752
    %v857 = vpop.f32.mrf.mxu0
    %v858 = vadd.f32 %v774, %v857
    %v859 = vpop.f32.mrf.mxu0
    %v860 = vpop.f32.mrf.mxu0
    %v861 = vpop.f32.mrf.mxu0
    %862 = vdwg.mxu0
    %863 = vst [vmem:[#allocation8] sm:$0xff] %v858
    // Predicated region
    $region34: #{tpu_custom_call.1} parent=1 // pred_check
      _
    $region35: #{tpu_custom_call.1} parent=1 // pred_check_branch
      %865 = sbr.rel (0) target = $region37
    $region36: #{tpu_custom_call.1} parent=1 // pred_region
      %s867 = ssub.s32 128, 128
      %868 = vsyncadd [#allocation4], %s867
      %s870 = sshll.u32 [#allocation8], 4
      %s871 = int_to_ptr.vmem [resolvable:$true] %s870
      %873 = dma.vmem_to_hbm [thread:$0]  %s871, 128, %s5, [#allocation4]
    $region37: #{tpu_custom_call.1} parent=1 // pred_fallthru
      _
    // Predicated region
    $region38: #{tpu_custom_call.1} parent=1 // pred_check
      _
    $region39: #{tpu_custom_call.1} parent=1 // pred_check_branch
      %875 = sbr.rel (0) target = $region41
    $region40: #{tpu_custom_call.1} parent=1 // pred_region
      %876 = dma.done [#allocation4], 128
    $region41: #{tpu_custom_call.1} parent=1 // pred_fallthru
      _
    %877 = vsyncpa [#allocation3], 1
    %878 = vsyncpa [#allocation6], 1
    %879 = vsyncpa [#allocation4], 1

</llo_original>
